<compile_context>
chip_gen: v7x
topology: tpu7x:2x2x1
jax: 0.10.0
libtpu: 0.0.40
codegen_flags: <defaults>
</compile_context>

<pallas_src>
import jax
import jax.numpy as jnp
from jax import lax
from jax.experimental import pallas as pl
from jax.experimental.pallas import tpu as pltpu


def _round_up(n, m):
    return ((n + m - 1) // m) * m


def _mlp_kernel(x_ref, w1_ref, b1_ref, w2_ref, b2_ref,
                w3_ref, b3_ref, w4_ref, b4_ref, o_ref):
    x = x_ref[...]                                                   # (TB, F) f32

    # fc1 + relu, transposed orientation: h1[o, b] = sum_f W1[o, f] * x[b, f]
    h1 = lax.dot_general(w1_ref[...], x, (((1,), (1,)), ((), ())),
                         preferred_element_type=jnp.float32)        # (20, TB)
    h1 = jnp.maximum(h1 + b1_ref[...], 0.0)

    # fc2 + relu
    h2 = jnp.dot(w2_ref[...], h1, preferred_element_type=jnp.float32)   # (7, TB)
    h2 = jnp.maximum(h2 + b2_ref[...], 0.0)

    # fc3 + relu
    h3 = jnp.dot(w3_ref[...], h2, preferred_element_type=jnp.float32)   # (5, TB)
    h3 = jnp.maximum(h3 + b3_ref[...], 0.0)

    # fc4 + sigmoid, lane-dense (1, TB) result
    z = jnp.dot(w4_ref[...], h3, preferred_element_type=jnp.float32)    # (1, TB)
    z = z + b4_ref[...]
    sig = pl.reciprocal(1.0 + jnp.exp(-z), approx=True)                 # EUP path
    o_ref[...] = sig.astype(o_ref.dtype)


def bpnet_cat_simple(x, params, *, block_batch=16384):
    """x: (B, input_size) f32.  params: w{i} in PyTorch (out,in) layout, b{i} (out,1)."""
    B, F = x.shape
    bytes_per_row = F * 4

    # Batch tile: target ~2 MiB of f32 x per grid step (per-step overhead
    # becomes negligible), multiple of 128 so the lane-major output block is
    # unmasked-vst friendly.
    tb_cap = max(128, ((2 << 20) // bytes_per_row) // 128 * 128)
    tb = min(block_batch, tb_cap, _round_up(B, 128))
    num_tiles = pl.cdiv(B, tb)

    # v7x megacore: the batch grid axis is sharded over 2 TensorCores; with 2-3
    # tiles one core starves, so re-split into >=4 tiles while keeping each
    # step >= ~1 MiB of x.
    if 1 < num_tiles < 4:
        tb4 = _round_up(pl.cdiv(B, 4), 128)
        if tb4 * bytes_per_row >= (1 << 20):
            tb = min(tb, tb4)
            num_tiles = pl.cdiv(B, tb)

    b_pad = num_tiles * tb

    w = [params[f"w{i}"].astype(jnp.float32) for i in (1, 2, 3, 4)]
    b = [params[f"b{i}"].astype(jnp.float32) for i in (1, 2, 3, 4)]

    def _const(i):          # weights/biases: same block every step -> VMEM-resident
        return (0, 0)

    in_specs = [pl.BlockSpec((tb, F), lambda i: (i, 0))]   # x streamed, f32, unpadded
    operands = [x]
    for wi, bi in zip(w, b):
        in_specs += [pl.BlockSpec(wi.shape, _const), pl.BlockSpec(bi.shape, _const)]
        operands += [wi, bi]

    flops = 2 * B * (F * 20 + 20 * 7 + 7 * 5 + 5 * 1)
    bytes_accessed = (B * F * 4 + b_pad * 4
                      + sum(int(a.size) * 4 for a in w)
                      + sum(int(a.size) * 4 for a in b))
    cost = pl.CostEstimate(flops=flops, transcendentals=B,
                           bytes_accessed=bytes_accessed)

    out = pl.pallas_call(
        _mlp_kernel,
        out_shape=jax.ShapeDtypeStruct((1, b_pad), jnp.float32),
        grid=(num_tiles,),
        in_specs=in_specs,
        out_specs=pl.BlockSpec((1, tb), lambda i: (0, i)),
        compiler_params=pltpu.CompilerParams(
            dimension_semantics=("parallel",)),    # v7x: shard batch over 2 TCs
        cost_estimate=cost,
    )(*operands)

    # (1, b_pad) lane-major batch -> (B, 1); tail columns (if any) are garbage
    # from the partial boundary block and are dropped here.
    return out.reshape(-1)[:B].reshape(B, 1)


def init_params(key, input_size):
    """Mirror nn.Linear default init (uniform +-1/sqrt(fan_in)).

    Weights in PyTorch's native (out, in) layout; biases as (out, 1) columns so
    they broadcast over the lane (batch) axis inside the kernel.
    """
    dims = [(input_size, 20), (20, 7), (7, 5), (5, 1)]
    params = {}
    keys = jax.random.split(key, 2 * len(dims))
    for i, (fan_in, fan_out) in enumerate(dims):
        bound = 1.0 / (fan_in ** 0.5)
        params[f"w{i + 1}"] = jax.random.uniform(
            keys[2 * i], (fan_out, fan_in), jnp.float32, -bound, bound)
        params[f"b{i + 1}"] = jax.random.uniform(
            keys[2 * i + 1], (fan_out, 1), jnp.float32, -bound, bound)
    return params


def bpnet_reference(x, params):
    """Pure-JAX f32 reference of the PyTorch forward pass."""
    h = x
    for i in (1, 2, 3):
        h = jnp.maximum(h @ params[f"w{i}"].T + params[f"b{i}"][:, 0], 0.0)
    z = h @ params["w4"].T + params["b4"][:, 0]
    return jax.nn.sigmoid(z)


if __name__ == "__main__":
    key = jax.random.PRNGKey(0)
    kx, kp = jax.random.split(key)

    batch, input_size = 8, 32
    x = jax.random.normal(kx, (batch, input_size), jnp.float32)
    params = init_params(kp, input_size)

    out = jax.jit(bpnet_cat_simple)(x, params)
    out = jax.block_until_ready(out)
    ref = bpnet_reference(x, params)

    assert out.shape == (batch, 1)
    assert bool(jnp.all(jnp.isfinite(out)))
    assert bool(jnp.allclose(out, ref, atol=5e-3, rtol=5e-3)), (
        f"max abs err = {float(jnp.max(jnp.abs(out - ref)))}")
    print("KERNEL_OK")
</pallas_src>

<mosaic_0001>
module attributes {stable_mosaic.version = 11 : i64} {
  func.func @_mlp_kernel(%arg0: i32, %arg1: memref<128x32xf32, #tpu.memory_space<vmem>>, %arg2: memref<20x32xf32, #tpu.memory_space<vmem>>, %arg3: memref<20x1xf32, #tpu.memory_space<vmem>>, %arg4: memref<7x20xf32, #tpu.memory_space<vmem>>, %arg5: memref<7x1xf32, #tpu.memory_space<vmem>>, %arg6: memref<5x7xf32, #tpu.memory_space<vmem>>, %arg7: memref<5x1xf32, #tpu.memory_space<vmem>>, %arg8: memref<1x5xf32, #tpu.memory_space<vmem>>, %arg9: memref<1x1xf32, #tpu.memory_space<vmem>>, %arg10: memref<1x128xf32, #tpu.memory_space<vmem>>) attributes {dimension_semantics = [#tpu.dimension_semantics<parallel>], iteration_bounds = array<i64: 1>, scalar_prefetch = 0 : i64, scratch_operands = 0 : i64, tpu.core_type = #tpu.core_type<tc>, window_params = [{transform_indices = @transform_0, window_bounds = array<i64: 128, 32>}, {pipeline_mode = #tpu.pipeline_mode<synchronous>, transform_indices = @transform_1, window_bounds = array<i64: 20, 32>}, {pipeline_mode = #tpu.pipeline_mode<synchronous>, transform_indices = @transform_2, window_bounds = array<i64: 20, 1>}, {pipeline_mode = #tpu.pipeline_mode<synchronous>, transform_indices = @transform_3, window_bounds = array<i64: 7, 20>}, {pipeline_mode = #tpu.pipeline_mode<synchronous>, transform_indices = @transform_4, window_bounds = array<i64: 7, 1>}, {pipeline_mode = #tpu.pipeline_mode<synchronous>, transform_indices = @transform_5, window_bounds = array<i64: 5, 7>}, {pipeline_mode = #tpu.pipeline_mode<synchronous>, transform_indices = @transform_6, window_bounds = array<i64: 5, 1>}, {pipeline_mode = #tpu.pipeline_mode<synchronous>, transform_indices = @transform_7, window_bounds = array<i64: 1, 5>}, {pipeline_mode = #tpu.pipeline_mode<synchronous>, transform_indices = @transform_8, window_bounds = array<i64: 1, 1>}, {transform_indices = @transform_9, window_bounds = array<i64: 1, 128>}]} {
    %c0 = arith.constant 0 : index
    %c0_0 = arith.constant 0 : index
    %0 = vector.load %arg1[%c0, %c0_0] : memref<128x32xf32, #tpu.memory_space<vmem>>, vector<128x32xf32>
    %c0_1 = arith.constant 0 : index
    %c0_2 = arith.constant 0 : index
    %1 = vector.load %arg2[%c0_1, %c0_2] : memref<20x32xf32, #tpu.memory_space<vmem>>, vector<20x32xf32>
    %cst = arith.constant dense<0.000000e+00> : vector<20x128xf32>
    %2 = tpu.matmul %1, %0, %cst {dimension_numbers = #tpu.dot_dimension_numbers<[1], [1], [0], [0], [0, 0, 1, 0], [], []>} : vector<20x32xf32>, vector<128x32xf32>, vector<20x128xf32> -> vector<20x128xf32>
    %c0_3 = arith.constant 0 : index
    %c0_4 = arith.constant 0 : index
    %3 = vector.load %arg3[%c0_3, %c0_4] : memref<20x1xf32, #tpu.memory_space<vmem>>, vector<20x1xf32>
    %4 = vector.broadcast %3 : vector<20x1xf32> to vector<20x128xf32>
    %5 = arith.addf %2, %4 : vector<20x128xf32>
    %cst_5 = arith.constant 0.000000e+00 : f32
    %6 = vector.broadcast %cst_5 : f32 to vector<20x128xf32>
    %7 = arith.maximumf %5, %6 : vector<20x128xf32>
    %c0_6 = arith.constant 0 : index
    %c0_7 = arith.constant 0 : index
    %8 = vector.load %arg4[%c0_6, %c0_7] : memref<7x20xf32, #tpu.memory_space<vmem>>, vector<7x20xf32>
    %cst_8 = arith.constant dense<0.000000e+00> : vector<7x128xf32>
    %9 = tpu.matmul %8, %7, %cst_8 {dimension_numbers = #tpu.dot_dimension_numbers<[1], [0], [0], [1], [0, 0, 1, 1], [], []>} : vector<7x20xf32>, vector<20x128xf32>, vector<7x128xf32> -> vector<7x128xf32>
    %c0_9 = arith.constant 0 : index
    %c0_10 = arith.constant 0 : index
    %10 = vector.load %arg5[%c0_9, %c0_10] : memref<7x1xf32, #tpu.memory_space<vmem>>, vector<7x1xf32>
    %11 = vector.broadcast %10 : vector<7x1xf32> to vector<7x128xf32>
    %12 = arith.addf %9, %11 : vector<7x128xf32>
    %cst_11 = arith.constant 0.000000e+00 : f32
    %13 = vector.broadcast %cst_11 : f32 to vector<7x128xf32>
    %14 = arith.maximumf %12, %13 : vector<7x128xf32>
    %c0_12 = arith.constant 0 : index
    %c0_13 = arith.constant 0 : index
    %15 = vector.load %arg6[%c0_12, %c0_13] : memref<5x7xf32, #tpu.memory_space<vmem>>, vector<5x7xf32>
    %cst_14 = arith.constant dense<0.000000e+00> : vector<5x128xf32>
    %16 = tpu.matmul %15, %14, %cst_14 {dimension_numbers = #tpu.dot_dimension_numbers<[1], [0], [0], [1], [0, 0, 1, 1], [], []>} : vector<5x7xf32>, vector<7x128xf32>, vector<5x128xf32> -> vector<5x128xf32>
    %c0_15 = arith.constant 0 : index
    %c0_16 = arith.constant 0 : index
    %17 = vector.load %arg7[%c0_15, %c0_16] : memref<5x1xf32, #tpu.memory_space<vmem>>, vector<5x1xf32>
    %18 = vector.broadcast %17 : vector<5x1xf32> to vector<5x128xf32>
    %19 = arith.addf %16, %18 : vector<5x128xf32>
    %cst_17 = arith.constant 0.000000e+00 : f32
    %20 = vector.broadcast %cst_17 : f32 to vector<5x128xf32>
    %21 = arith.maximumf %19, %20 : vector<5x128xf32>
    %c0_18 = arith.constant 0 : index
    %c0_19 = arith.constant 0 : index
    %22 = vector.load %arg8[%c0_18, %c0_19] : memref<1x5xf32, #tpu.memory_space<vmem>>, vector<1x5xf32>
    %cst_20 = arith.constant dense<0.000000e+00> : vector<1x128xf32>
    %23 = tpu.matmul %22, %21, %cst_20 {dimension_numbers = #tpu.dot_dimension_numbers<[1], [0], [0], [1], [0, 0, 1, 1], [], []>} : vector<1x5xf32>, vector<5x128xf32>, vector<1x128xf32> -> vector<1x128xf32>
    %c0_21 = arith.constant 0 : index
    %c0_22 = arith.constant 0 : index
    %24 = vector.load %arg9[%c0_21, %c0_22] : memref<1x1xf32, #tpu.memory_space<vmem>>, vector<1x1xf32>
    %25 = vector.broadcast %24 : vector<1x1xf32> to vector<1x128xf32>
    %26 = arith.addf %23, %25 : vector<1x128xf32>
    %cst_23 = arith.constant 0.000000e+00 : f32
    %27 = vector.broadcast %cst_23 : f32 to vector<1x128xf32>
    %28 = arith.subf %27, %26 : vector<1x128xf32>
    %29 = math.exp %28 : vector<1x128xf32>
    %cst_24 = arith.constant 1.000000e+00 : f32
    %30 = vector.broadcast %cst_24 : f32 to vector<1x128xf32>
    %31 = arith.addf %30, %29 : vector<1x128xf32>
    %32 = tpu.reciprocal %31 {approx = true} : vector<1x128xf32> -> vector<1x128xf32>
    %c0_25 = arith.constant 0 : index
    %c0_26 = arith.constant 0 : index
    %33 = vector.load %arg10[%c0_25, %c0_26] : memref<1x128xf32, #tpu.memory_space<vmem>>, vector<1x128xf32>
    tpu.vector_store %arg10[%c0_25, %c0_26], %32 {strides = array<i32>} : memref<1x128xf32, #tpu.memory_space<vmem>>, vector<1x128xf32>,
    return
  }
  func.func @transform_0(%arg0: i32) -> (i32, i32) {
    %c0_i32 = arith.constant 0 : i32
    %c0_i32_0 = arith.constant 0 : i32
    return %arg0, %c0_i32 : i32, i32
  }
  func.func @transform_1(%arg0: i32) -> (i32, i32) {
    %c0_i32 = arith.constant 0 : i32
    %c0_i32_0 = arith.constant 0 : i32
    %c0_i32_1 = arith.constant 0 : i32
    return %c0_i32, %c0_i32_0 : i32, i32
  }
  func.func @transform_2(%arg0: i32) -> (i32, i32) {
    %c0_i32 = arith.constant 0 : i32
    %c0_i32_0 = arith.constant 0 : i32
    %c0_i32_1 = arith.constant 0 : i32
    return %c0_i32, %c0_i32_0 : i32, i32
  }
  func.func @transform_3(%arg0: i32) -> (i32, i32) {
    %c0_i32 = arith.constant 0 : i32
    %c0_i32_0 = arith.constant 0 : i32
    %c0_i32_1 = arith.constant 0 : i32
    return %c0_i32, %c0_i32_0 : i32, i32
  }
  func.func @transform_4(%arg0: i32) -> (i32, i32) {
    %c0_i32 = arith.constant 0 : i32
    %c0_i32_0 = arith.constant 0 : i32
    %c0_i32_1 = arith.constant 0 : i32
    return %c0_i32, %c0_i32_0 : i32, i32
  }
  func.func @transform_5(%arg0: i32) -> (i32, i32) {
    %c0_i32 = arith.constant 0 : i32
    %c0_i32_0 = arith.constant 0 : i32
    %c0_i32_1 = arith.constant 0 : i32
    return %c0_i32, %c0_i32_0 : i32, i32
  }
  func.func @transform_6(%arg0: i32) -> (i32, i32) {
    %c0_i32 = arith.constant 0 : i32
    %c0_i32_0 = arith.constant 0 : i32
    %c0_i32_1 = arith.constant 0 : i32
    return %c0_i32, %c0_i32_0 : i32, i32
  }
  func.func @transform_7(%arg0: i32) -> (i32, i32) {
    %c0_i32 = arith.constant 0 : i32
    %c0_i32_0 = arith.constant 0 : i32
    %c0_i32_1 = arith.constant 0 : i32
    return %c0_i32, %c0_i32_0 : i32, i32
  }
  func.func @transform_8(%arg0: i32) -> (i32, i32) {
    %c0_i32 = arith.constant 0 : i32
    %c0_i32_0 = arith.constant 0 : i32
    %c0_i32_1 = arith.constant 0 : i32
    return %c0_i32, %c0_i32_0 : i32, i32
  }
  func.func @transform_9(%arg0: i32) -> (i32, i32) {
    %c0_i32 = arith.constant 0 : i32
    %c0_i32_0 = arith.constant 0 : i32
    return %c0_i32, %arg0 : i32, i32
  }
}

</mosaic_0001>

<llo_original>
// kernel: bpnet_cat_simple.1
$region0: #{bpnet_cat_simple.1}
  #allocation0 [shape = 'u32[]', space=smem, size = 0x4, offset = 0x4, fixed_abs, tag = 'smem constant byte address 0x4 - core index']
  #allocation1 [shape = 'u32[144,128]{1,0:T(1,128)}', space=vmem, size = 0x12000, scoped, tag = 'internal scratch']
  #allocation2 [shape = 'f32[1,1]{1,0:T(1,128)S(1)}', space=vmem, size = 0x200, scoped, tag = 'scoped memory for bpnet_cat_simple.1']
  %s0 = inlined_call_operand.vmem [shape: f32[8,32], index: 0, kind: input, shape index: {}]
  %s1 = inlined_call_operand.vmem [shape: f32[20,32], index: 1, kind: input, shape index: {}]
  %s2 = inlined_call_operand.vmem [shape: f32[20,1], index: 2, kind: input, shape index: {}]
  %s3 = inlined_call_operand.vmem [shape: f32[7,20], index: 3, kind: input, shape index: {}]
  %s4 = inlined_call_operand.vmem [shape: f32[7,1], index: 4, kind: input, shape index: {}]
  %s5 = inlined_call_operand.vmem [shape: f32[5,7], index: 5, kind: input, shape index: {}]
  %s6 = inlined_call_operand.vmem [shape: f32[5,1], index: 6, kind: input, shape index: {}]
  %s7 = inlined_call_operand.vmem [shape: f32[1,5], index: 7, kind: input, shape index: {}]
  %s8 = inlined_call_operand.<no memory space> [shape: f32[1,1], index: 8, kind: input, shape index: {}]
  %s9 = inlined_call_operand.vmem [shape: f32[1,128], index: 9, kind: output, shape index: {}]
  %s10 = sld [smem:[#allocation0]]
  $region46: #{bpnet_cat_simple.1} parent=0
    _
  %s12 = ssub.s32 1, %s10
  %s13 = scalar_select 0, %s12, %s10
  %v14 = vstv %s8
  %15 = vst [vmem:[#allocation2] sm:$0x1] %v14
  // Predicated region
  $region2: #{bpnet_cat_simple.1} parent=0 // pred_check
    _
  $region3: #{bpnet_cat_simple.1} parent=0 // pred_check_branch
    %17 = sbr.rel (0) target = $region5
  $region4: #{bpnet_cat_simple.1} parent=0 // pred_region
    _
  $region5: #{bpnet_cat_simple.1} parent=0 // pred_fallthru
    _
  // Predicated region
  $region6: #{bpnet_cat_simple.1} parent=0 // pred_check
    _
  $region7: #{bpnet_cat_simple.1} parent=0 // pred_check_branch
    %19 = sbr.rel (0) target = $region9
  $region8: #{bpnet_cat_simple.1} parent=0 // pred_region
    _
  $region9: #{bpnet_cat_simple.1} parent=0 // pred_fallthru
    _
  // Predicated region
  $region10: #{bpnet_cat_simple.1} parent=0 // pred_check
    _
  $region11: #{bpnet_cat_simple.1} parent=0 // pred_check_branch
    %21 = sbr.rel (0) target = $region13
  $region12: #{bpnet_cat_simple.1} parent=0 // pred_region
    _
  $region13: #{bpnet_cat_simple.1} parent=0 // pred_fallthru
    _
  // Predicated region
  $region14: #{bpnet_cat_simple.1} parent=0 // pred_check
    _
  $region15: #{bpnet_cat_simple.1} parent=0 // pred_check_branch
    %23 = sbr.rel (0) target = $region17
  $region16: #{bpnet_cat_simple.1} parent=0 // pred_region
    _
  $region17: #{bpnet_cat_simple.1} parent=0 // pred_fallthru
    _
  // Predicated region
  $region18: #{bpnet_cat_simple.1} parent=0 // pred_check
    _
  $region19: #{bpnet_cat_simple.1} parent=0 // pred_check_branch
    %25 = sbr.rel (0) target = $region21
  $region20: #{bpnet_cat_simple.1} parent=0 // pred_region
    _
  $region21: #{bpnet_cat_simple.1} parent=0 // pred_fallthru
    _
  // Predicated region
  $region22: #{bpnet_cat_simple.1} parent=0 // pred_check
    _
  $region23: #{bpnet_cat_simple.1} parent=0 // pred_check_branch
    %27 = sbr.rel (0) target = $region25
  $region24: #{bpnet_cat_simple.1} parent=0 // pred_region
    _
  $region25: #{bpnet_cat_simple.1} parent=0 // pred_fallthru
    _
  // Predicated region
  $region26: #{bpnet_cat_simple.1} parent=0 // pred_check
    _
  $region27: #{bpnet_cat_simple.1} parent=0 // pred_check_branch
    %29 = sbr.rel (0) target = $region29
  $region28: #{bpnet_cat_simple.1} parent=0 // pred_region
    _
  $region29: #{bpnet_cat_simple.1} parent=0 // pred_fallthru
    _
  // Predicated region
  $region30: #{bpnet_cat_simple.1} parent=0 // pred_check
    _
  $region31: #{bpnet_cat_simple.1} parent=0 // pred_check_branch
    %31 = sbr.rel (0) target = $region33
  $region32: #{bpnet_cat_simple.1} parent=0 // pred_region
    _
  $region33: #{bpnet_cat_simple.1} parent=0 // pred_fallthru
    _
  // Predicated region
  $region34: #{bpnet_cat_simple.1} parent=0 // pred_check
    _
  $region35: #{bpnet_cat_simple.1} parent=0 // pred_check_branch
    %33 = sbr.rel (0) target = $region37
  $region36: #{bpnet_cat_simple.1} parent=0 // pred_region
    _
  $region37: #{bpnet_cat_simple.1} parent=0 // pred_fallthru
    _
  %v34 = vld [vmem:[%s0] sm:$0xff]
  %v35 = vld [vmem:[%s0 + $0x8] sm:$0xff]
  %v36 = vld [vmem:[%s0 + $0x10] sm:$0xff]
  %v37 = vld [vmem:[%s0 + $0x18] sm:$0xff]
  %v38 = vld [vmem:[%s0 + $0x20] sm:$0xff]
  %v39 = vld [vmem:[%s0 + $0x28] sm:$0xff]
  %v40 = vld [vmem:[%s0 + $0x30] sm:$0xff]
  %v41 = vld [vmem:[%s0 + $0x38] sm:$0xff]
  %v42 = vld [vmem:[%s0 + $0x40] sm:$0xff]
  %v43 = vld [vmem:[%s0 + $0x48] sm:$0xff]
  %v44 = vld [vmem:[%s0 + $0x50] sm:$0xff]
  %v45 = vld [vmem:[%s0 + $0x58] sm:$0xff]
  %v46 = vld [vmem:[%s0 + $0x60] sm:$0xff]
  %v47 = vld [vmem:[%s0 + $0x68] sm:$0xff]
  %v48 = vld [vmem:[%s0 + $0x70] sm:$0xff]
  %v49 = vld [vmem:[%s0 + $0x78] sm:$0xff]
  %v50 = vld [vmem:[%s1] sm:$0xff]
  %v51 = vld [vmem:[%s1 + $0x8] sm:$0xff]
  %v52 = vld [vmem:[%s1 + $0x10] sm:$0xf]
  %v53 = vld [vmem:[%s2] sm:$0xff]
  %v54 = vld [vmem:[%s2 + $0x8] sm:$0xff]
  %v55 = vld [vmem:[%s2 + $0x10] sm:$0xf]
  %57 = vset.pattern.permute.xlu0 0
  %58 = vperm.xlu0 %57, %v53
  %v59 = vpop.permute.xlu0 %58
  %62 = vset.pattern.permute.xlu0 0
  %63 = vperm.xlu0 %62, %v54
  %v64 = vpop.permute.xlu0 %63
  %67 = vset.pattern.permute.xlu0 0
  %68 = vperm.xlu0 %67, %v55
  %v69 = vpop.permute.xlu0 %68
  %vm71 = vcmask 261120
  %v73 = vsel %vm71, %v50, 0
  %v76 = vsel %vm71, %v51, 0
  %v79 = vsel %vm71, %v52, 0
  %v82 = vsel %vm71, %v34, 0
  %v85 = vsel %vm71, %v35, 0
  %v88 = vsel %vm71, %v36, 0
  %v91 = vsel %vm71, %v37, 0
  %v94 = vsel %vm71, %v38, 0
  %v97 = vsel %vm71, %v39, 0
  %v100 = vsel %vm71, %v40, 0
  %v103 = vsel %vm71, %v41, 0
  %v106 = vsel %vm71, %v42, 0
  %v109 = vsel %vm71, %v43, 0
  %v112 = vsel %vm71, %v44, 0
  %v115 = vsel %vm71, %v45, 0
  %v118 = vsel %vm71, %v46, 0
  %v121 = vsel %vm71, %v47, 0
  %v124 = vsel %vm71, %v48, 0
  %v127 = vsel %vm71, %v49, 0
  %129 = vmatprep.subr.mxu0 0.0
  %130 = vmatpush1.xpose.msra.mxu0 %v82
  %131 = vmatprep.subr.mxu0 0.0
  %132 = vmatpush1.xpose.msra.mxu0 %v85
  %133 = vmatprep.subr.mxu0 0.0
  %134 = vmatpush1.xpose.msra.mxu0 %v88
  %135 = vmatprep.subr.mxu0 0.0
  %136 = vmatpush1.xpose.msra.mxu0 %v91
  %137 = vmatprep.subr.mxu0 0.0
  %138 = vmatpush1.xpose.msra.mxu0 %v94
  %139 = vmatprep.subr.mxu0 0.0
  %140 = vmatpush1.xpose.msra.mxu0 %v97
  %141 = vmatprep.subr.mxu0 0.0
  %142 = vmatpush1.xpose.msra.mxu0 %v100
  %143 = vmatprep.subr.mxu0 0.0
  %144 = vmatpush1.xpose.msra.mxu0 %v103
  %145 = vmatprep.subr.mxu0 0.0
  %146 = vmatpush1.xpose.msra.mxu0 %v106
  %147 = vmatprep.subr.mxu0 0.0
  %148 = vmatpush1.xpose.msra.mxu0 %v109
  %149 = vmatprep.subr.mxu0 0.0
  %150 = vmatpush1.xpose.msra.mxu0 %v112
  %151 = vmatprep.subr.mxu0 0.0
  %152 = vmatpush1.xpose.msra.mxu0 %v115
  %153 = vmatprep.subr.mxu0 0.0
  %154 = vmatpush1.xpose.msra.mxu0 %v118
  %155 = vmatprep.subr.mxu0 0.0
  %156 = vmatpush1.xpose.msra.mxu0 %v121
  %157 = vmatprep.subr.mxu0 0.0
  %158 = vmatpush1.xpose.msra.mxu0 %v124
  %159 = vmatprep.subr.mxu0 0.0
  %160 = vmatpush1.xpose.msra.mxu0 %v127
  %161 = vmatprep.subr.mxu0 0.0
  %162 = vmatpush1.xpose.msra.mxu0 0.0
  %163 = vmatprep.subr.mxu0 0.0
  %164 = vmatpush1.xpose.msra.mxu0 0.0
  %165 = vmatprep.subr.mxu0 0.0
  %166 = vmatpush1.xpose.msra.mxu0 0.0
  %167 = vmatprep.subr.mxu0 0.0
  %168 = vmatpush1.xpose.msra.mxu0 0.0
  %169 = vmatprep.subr.mxu0 0.0
  %170 = vmatpush1.xpose.msra.mxu0 0.0
  %171 = vmatprep.subr.mxu0 0.0
  %172 = vmatpush1.xpose.msra.mxu0 0.0
  %173 = vmatprep.subr.mxu0 0.0
  %174 = vmatpush1.xpose.msra.mxu0 0.0
  %175 = vmatprep.subr.mxu0 0.0
  %176 = vmatpush1.xpose.msra.mxu0 0.0
  %177 = vmatprep.subr.mxu0 0.0
  %178 = vmatpush1.xpose.msra.mxu0 0.0
  %179 = vmatprep.subr.mxu0 0.0
  %180 = vmatpush1.xpose.msra.mxu0 0.0
  %181 = vmatprep.subr.mxu0 0.0
  %182 = vmatpush1.xpose.msra.mxu0 0.0
  %183 = vmatprep.subr.mxu0 0.0
  %184 = vmatpush1.xpose.msra.mxu0 0.0
  %185 = vmatprep.subr.mxu0 0.0
  %186 = vmatpush1.xpose.msra.mxu0 0.0
  %187 = vmatprep.subr.mxu0 0.0
  %188 = vmatpush1.xpose.msra.mxu0 0.0
  %189 = vmatprep.subr.mxu0 0.0
  %190 = vmatpush1.xpose.msra.mxu0 0.0
  %191 = vmatprep.subr.mxu0 0.0
  %192 = vmatpush1.xpose.msra.mxu0 0.0
  %193 = vmatprep.mubr.f32.mxu0 0.0
  %194 = vmatmul.mubr.f32.gmra.mrb[0].mxu0 %v73
  %v195 = vpop.f32.mrb[0].mxu0
  %v196 = vadd.f32 %v59, %v195
  %v197 = vpop.f32.mrb[0].mxu0
  %198 = vmatprep.mubr.f32.mxu0 0.0
  %199 = vmatmul.mubr.f32.gmra.mrb[0].mxu0 %v76
  %v200 = vpop.f32.mrb[0].mxu0
  %v201 = vadd.f32 %v64, %v200
  %v202 = vpop.f32.mrb[0].mxu0
  %203 = vmatprep.mubr.f32.mxu0 0.0
  %204 = vmatmul.mubr.f32.gmra.mrb[0].mxu0 %v79
  %v205 = vpop.f32.mrb[0].mxu0
  %v206 = vadd.f32 %v69, %v205
  %v207 = vpop.f32.mrb[0].mxu0
  %208 = vdwg.mxu0
  %v209 = vmax.f32 %v196, 0.0
  %v210 = vmax.f32 %v201, 0.0
  %v211 = vmax.f32 %v206, 0.0
  %v212 = vld [vmem:[%s3] sm:$0x7f]
  %v213 = vld [vmem:[%s4] sm:$0x7f]
  %215 = vset.pattern.permute.xlu0 0
  %216 = vperm.xlu0 %215, %v213
  %v217 = vpop.permute.xlu0 %216
  %vm219 = vcmask 162816
  %v221 = vsel %vm219, %v212, 0
  %vm223 = vcmask 1043456
  %v225 = vsel %vm223, %v211, 0
  %227 = vmatprep.subr.mxu0 0.0
  %228 = vmatpush1.msra.mxu0 %v209
  %229 = vmatprep.subr.mxu0 0.0
  %230 = vmatpush1.msra.mxu0 %v210
  %231 = vmatprep.subr.mxu0 0.0
  %232 = vmatpush1.msra.mxu0 %v225
  %233 = vmatprep.subr.mxu0 0.0
  %234 = vmatpush1.msra.mxu0 0.0
  %235 = vmatprep.subr.mxu0 0.0
  %236 = vmatpush1.msra.mxu0 0.0
  %237 = vmatprep.subr.mxu0 0.0
  %238 = vmatpush1.msra.mxu0 0.0
  %239 = vmatprep.subr.mxu0 0.0
  %240 = vmatpush1.msra.mxu0 0.0
  %241 = vmatprep.subr.mxu0 0.0
  %242 = vmatpush1.msra.mxu0 0.0
  %243 = vmatprep.subr.mxu0 0.0
  %244 = vmatpush1.msra.mxu0 0.0
  %245 = vmatprep.subr.mxu0 0.0
  %246 = vmatpush1.msra.mxu0 0.0
  %247 = vmatprep.subr.mxu0 0.0
  %248 = vmatpush1.msra.mxu0 0.0
  %249 = vmatprep.subr.mxu0 0.0
  %250 = vmatpush1.msra.mxu0 0.0
  %251 = vmatprep.subr.mxu0 0.0
  %252 = vmatpush1.msra.mxu0 0.0
  %253 = vmatprep.subr.mxu0 0.0
  %254 = vmatpush1.msra.mxu0 0.0
  %255 = vmatprep.subr.mxu0 0.0
  %256 = vmatpush1.msra.mxu0 0.0
  %257 = vmatprep.subr.mxu0 0.0
  %258 = vmatpush1.msra.mxu0 0.0
  %259 = vmatprep.subr.mxu0 0.0
  %260 = vmatpush1.msra.mxu0 0.0
  %261 = vmatprep.subr.mxu0 0.0
  %262 = vmatpush1.msra.mxu0 0.0
  %263 = vmatprep.subr.mxu0 0.0
  %264 = vmatpush1.msra.mxu0 0.0
  %265 = vmatprep.subr.mxu0 0.0
  %266 = vmatpush1.msra.mxu0 0.0
  %267 = vmatprep.subr.mxu0 0.0
  %268 = vmatpush1.msra.mxu0 0.0
  %269 = vmatprep.subr.mxu0 0.0
  %270 = vmatpush1.msra.mxu0 0.0
  %271 = vmatprep.subr.mxu0 0.0
  %272 = vmatpush1.msra.mxu0 0.0
  %273 = vmatprep.subr.mxu0 0.0
  %274 = vmatpush1.msra.mxu0 0.0
  %275 = vmatprep.subr.mxu0 0.0
  %276 = vmatpush1.msra.mxu0 0.0
  %277 = vmatprep.subr.mxu0 0.0
  %278 = vmatpush1.msra.mxu0 0.0
  %279 = vmatprep.subr.mxu0 0.0
  %280 = vmatpush1.msra.mxu0 0.0
  %281 = vmatprep.subr.mxu0 0.0
  %282 = vmatpush1.msra.mxu0 0.0
  %283 = vmatprep.subr.mxu0 0.0
  %284 = vmatpush1.msra.mxu0 0.0
  %285 = vmatprep.subr.mxu0 0.0
  %286 = vmatpush1.msra.mxu0 0.0
  %287 = vmatprep.subr.mxu0 0.0
  %288 = vmatpush1.msra.mxu0 0.0
  %289 = vmatprep.subr.mxu0 0.0
  %290 = vmatpush1.msra.mxu0 0.0
  %291 = vmatprep.mubr.f32.mxu0 0.0
  %292 = vmatmul.mubr.f32.gmra.mrb[0].mxu0 %v221
  %v293 = vpop.f32.mrb[0].mxu0
  %v294 = vadd.f32 %v217, %v293
  %v295 = vpop.f32.mrb[0].mxu0
  %296 = vdwg.mxu0
  %v297 = vmax.f32 %v294, 0.0
  %v298 = vld [vmem:[%s5] sm:$0x1f]
  %v299 = vld [vmem:[%s6] sm:$0x1f]
  %301 = vset.pattern.permute.xlu0 0
  %302 = vperm.xlu0 %301, %v299
  %v303 = vpop.permute.xlu0 %302
  %vm305 = vcmask 56320
  %v307 = vsel %vm305, %v298, 0
  %vm309 = vcmask 1046528
  %v311 = vsel %vm309, %v297, 0
  %313 = vmatprep.subr.mxu0 0.0
  %314 = vmatpush1.msra.mxu0 %v311
  %315 = vmatprep.subr.mxu0 0.0
  %316 = vmatpush1.msra.mxu0 0.0
  %317 = vmatprep.subr.mxu0 0.0
  %318 = vmatpush1.msra.mxu0 0.0
  %319 = vmatprep.subr.mxu0 0.0
  %320 = vmatpush1.msra.mxu0 0.0
  %321 = vmatprep.subr.mxu0 0.0
  %322 = vmatpush1.msra.mxu0 0.0
  %323 = vmatprep.subr.mxu0 0.0
  %324 = vmatpush1.msra.mxu0 0.0
  %325 = vmatprep.subr.mxu0 0.0
  %326 = vmatpush1.msra.mxu0 0.0
  %327 = vmatprep.subr.mxu0 0.0
  %328 = vmatpush1.msra.mxu0 0.0
  %329 = vmatprep.subr.mxu0 0.0
  %330 = vmatpush1.msra.mxu0 0.0
  %331 = vmatprep.subr.mxu0 0.0
  %332 = vmatpush1.msra.mxu0 0.0
  %333 = vmatprep.subr.mxu0 0.0
  %334 = vmatpush1.msra.mxu0 0.0
  %335 = vmatprep.subr.mxu0 0.0
  %336 = vmatpush1.msra.mxu0 0.0
  %337 = vmatprep.subr.mxu0 0.0
  %338 = vmatpush1.msra.mxu0 0.0
  %339 = vmatprep.subr.mxu0 0.0
  %340 = vmatpush1.msra.mxu0 0.0
  %341 = vmatprep.subr.mxu0 0.0
  %342 = vmatpush1.msra.mxu0 0.0
  %343 = vmatprep.subr.mxu0 0.0
  %344 = vmatpush1.msra.mxu0 0.0
  %345 = vmatprep.subr.mxu0 0.0
  %346 = vmatpush1.msra.mxu0 0.0
  %347 = vmatprep.subr.mxu0 0.0
  %348 = vmatpush1.msra.mxu0 0.0
  %349 = vmatprep.subr.mxu0 0.0
  %350 = vmatpush1.msra.mxu0 0.0
  %351 = vmatprep.subr.mxu0 0.0
  %352 = vmatpush1.msra.mxu0 0.0
  %353 = vmatprep.subr.mxu0 0.0
  %354 = vmatpush1.msra.mxu0 0.0
  %355 = vmatprep.subr.mxu0 0.0
  %356 = vmatpush1.msra.mxu0 0.0
  %357 = vmatprep.subr.mxu0 0.0
  %358 = vmatpush1.msra.mxu0 0.0
  %359 = vmatprep.subr.mxu0 0.0
  %360 = vmatpush1.msra.mxu0 0.0
  %361 = vmatprep.subr.mxu0 0.0
  %362 = vmatpush1.msra.mxu0 0.0
  %363 = vmatprep.subr.mxu0 0.0
  %364 = vmatpush1.msra.mxu0 0.0
  %365 = vmatprep.subr.mxu0 0.0
  %366 = vmatpush1.msra.mxu0 0.0
  %367 = vmatprep.subr.mxu0 0.0
  %368 = vmatpush1.msra.mxu0 0.0
  %369 = vmatprep.subr.mxu0 0.0
  %370 = vmatpush1.msra.mxu0 0.0
  %371 = vmatprep.subr.mxu0 0.0
  %372 = vmatpush1.msra.mxu0 0.0
  %373 = vmatprep.subr.mxu0 0.0
  %374 = vmatpush1.msra.mxu0 0.0
  %375 = vmatprep.subr.mxu0 0.0
  %376 = vmatpush1.msra.mxu0 0.0
  %377 = vmatprep.mubr.f32.mxu0 0.0
  %378 = vmatmul.mubr.f32.gmra.mrb[0].mxu0 %v307
  %v379 = vpop.f32.mrb[0].mxu0
  %v380 = vadd.f32 %v303, %v379
  %v381 = vpop.f32.mrb[0].mxu0
  %382 = vdwg.mxu0
  %v383 = vmax.f32 %v380, 0.0
  %v384 = vld [vmem:[%s7] sm:$0x1]
  %v385 = vld [vmem:[#allocation2] sm:$0x1]
  %387 = vset.pattern.permute.xlu0 0
  %388 = vperm.xlu0 %387, %v385
  %v389 = vpop.permute.xlu0 %388
  %v391 = vlaneseq
  %v392 = vshrl.u32 %v391, 7
  %v393 = vsub.s32 0, %v392
  %v394 = vrot.slane %v389, %v393
  %vm395 = vcmask 39936
  %v397 = vsel %vm395, %v384, 0
  %vm399 = vcmask 1044480
  %v401 = vsel %vm399, %v383, 0
  %403 = vmatprep.subr.mxu0 0.0
  %404 = vmatpush1.msra.mxu0 %v401
  %405 = vmatprep.subr.mxu0 0.0
  %406 = vmatpush1.msra.mxu0 0.0
  %407 = vmatprep.subr.mxu0 0.0
  %408 = vmatpush1.msra.mxu0 0.0
  %409 = vmatprep.subr.mxu0 0.0
  %410 = vmatpush1.msra.mxu0 0.0
  %411 = vmatprep.subr.mxu0 0.0
  %412 = vmatpush1.msra.mxu0 0.0
  %413 = vmatprep.subr.mxu0 0.0
  %414 = vmatpush1.msra.mxu0 0.0
  %415 = vmatprep.subr.mxu0 0.0
  %416 = vmatpush1.msra.mxu0 0.0
  %417 = vmatprep.subr.mxu0 0.0
  %418 = vmatpush1.msra.mxu0 0.0
  %419 = vmatprep.subr.mxu0 0.0
  %420 = vmatpush1.msra.mxu0 0.0
  %421 = vmatprep.subr.mxu0 0.0
  %422 = vmatpush1.msra.mxu0 0.0
  %423 = vmatprep.subr.mxu0 0.0
  %424 = vmatpush1.msra.mxu0 0.0
  %425 = vmatprep.subr.mxu0 0.0
  %426 = vmatpush1.msra.mxu0 0.0
  %427 = vmatprep.subr.mxu0 0.0
  %428 = vmatpush1.msra.mxu0 0.0
  %429 = vmatprep.subr.mxu0 0.0
  %430 = vmatpush1.msra.mxu0 0.0
  %431 = vmatprep.subr.mxu0 0.0
  %432 = vmatpush1.msra.mxu0 0.0
  %433 = vmatprep.subr.mxu0 0.0
  %434 = vmatpush1.msra.mxu0 0.0
  %435 = vmatprep.subr.mxu0 0.0
  %436 = vmatpush1.msra.mxu0 0.0
  %437 = vmatprep.subr.mxu0 0.0
  %438 = vmatpush1.msra.mxu0 0.0
  %439 = vmatprep.subr.mxu0 0.0
  %440 = vmatpush1.msra.mxu0 0.0
  %441 = vmatprep.subr.mxu0 0.0
  %442 = vmatpush1.msra.mxu0 0.0
  %443 = vmatprep.subr.mxu0 0.0
  %444 = vmatpush1.msra.mxu0 0.0
  %445 = vmatprep.subr.mxu0 0.0
  %446 = vmatpush1.msra.mxu0 0.0
  %447 = vmatprep.subr.mxu0 0.0
  %448 = vmatpush1.msra.mxu0 0.0
  %449 = vmatprep.subr.mxu0 0.0
  %450 = vmatpush1.msra.mxu0 0.0
  %451 = vmatprep.subr.mxu0 0.0
  %452 = vmatpush1.msra.mxu0 0.0
  %453 = vmatprep.subr.mxu0 0.0
  %454 = vmatpush1.msra.mxu0 0.0
  %455 = vmatprep.subr.mxu0 0.0
  %456 = vmatpush1.msra.mxu0 0.0
  %457 = vmatprep.subr.mxu0 0.0
  %458 = vmatpush1.msra.mxu0 0.0
  %459 = vmatprep.subr.mxu0 0.0
  %460 = vmatpush1.msra.mxu0 0.0
  %461 = vmatprep.subr.mxu0 0.0
  %462 = vmatpush1.msra.mxu0 0.0
  %463 = vmatprep.subr.mxu0 0.0
  %464 = vmatpush1.msra.mxu0 0.0
  %465 = vmatprep.subr.mxu0 0.0
  %466 = vmatpush1.msra.mxu0 0.0
  %467 = vmatprep.mubr.f32.mxu0 0.0
  %468 = vmatmul.mubr.f32.gmra.mrb[0].mxu0 %v397
  %v469 = vpop.f32.mrb[0].mxu0
  %v470 = vadd.f32 %v394, %v469
  %v471 = vpop.f32.mrb[0].mxu0
  %472 = vdwg.mxu0
  %v473 = vsub.f32 0.0, %v470
  %v474 = vmul.f32 %v473, 1.442695
  %v475 = vpow.pop %v474
  %v476 = vadd.f32 %v475, 1.0
  %v477 = vrcp.pop %v476
  %478 = vst [vmem:[%s9] sm:$0x1] %v477
  // Predicated region
  $region38: #{bpnet_cat_simple.1} parent=0 // pred_check
    _
  $region39: #{bpnet_cat_simple.1} parent=0 // pred_check_branch
    %480 = sbr.rel (0) target = $region41
  $region40: #{bpnet_cat_simple.1} parent=0 // pred_region
    _
  $region41: #{bpnet_cat_simple.1} parent=0 // pred_fallthru
    _
  // Predicated region
  $region42: #{bpnet_cat_simple.1} parent=0 // pred_check
    _
  $region43: #{bpnet_cat_simple.1} parent=0 // pred_check_branch
    %482 = sbr.rel (0) target = $region45
  $region44: #{bpnet_cat_simple.1} parent=0 // pred_region
    _
  $region45: #{bpnet_cat_simple.1} parent=0 // pred_fallthru
    _

</llo_original>
